<compile_context>
chip_gen: v7x
topology: tpu7x:2x2x1
jax: 0.10.0
libtpu: 0.0.40
codegen_flags: <defaults>
</compile_context>

<pallas_src>
import math

import jax
import jax.numpy as jnp
from jax.experimental import pallas as pl
from jax.experimental.pallas import tpu as pltpu


def _round_up(x, m):
    return (x + m - 1) // m * m


def _make_kernel(*, scale, k_orig, k_pad, tk, vl_mode):
    """Build the flash-attention kernel body.

    vl_mode: "none"  -> no masking (valid_lens is None)
             "smem"  -> 1-D valid_lens, scalar-prefetched (B,) int32 in SMEM
             "vmem"  -> 2-D valid_lens, (TQ, 1) int32 VMEM block per Q tile
    """
    needs_key_pad_mask = k_pad != k_orig

    def kernel(*refs):
        if vl_mode == "none":
            q_ref, k_ref, v_ref, o_ref, m_sc, l_sc, acc_sc = refs
            vl_ref = None
        else:
            vl_ref, q_ref, k_ref, v_ref, o_ref, m_sc, l_sc, acc_sc = refs

        ki = pl.program_id(2)

        @pl.when(ki == 0)
        def _init():
            m_sc[...] = jnp.full_like(m_sc, -jnp.inf)
            l_sc[...] = jnp.zeros_like(l_sc)
            acc_sc[...] = jnp.zeros_like(acc_sc)

        # Fold 1/sqrt(d) into q: TQ*D multiplies instead of TQ*TK on the scores.
        q = q_ref[...] * jnp.asarray(scale, q_ref.dtype)           # (TQ, D_pad) native dtype
        k = k_ref[...]                                             # (TK, D_pad)
        s = jax.lax.dot_general(                                   # (TQ, TK) f32 on the MXU
            q, k, (((1,), (1,)), ((), ())), preferred_element_type=jnp.float32)

        if vl_mode != "none" or needs_key_pad_mask:
            key_idx = tk * ki + jax.lax.broadcasted_iota(jnp.int32, s.shape, 1)

        if vl_mode == "smem":
            vl = vl_ref[pl.program_id(0)]                          # int32 scalar from SMEM
            s = jnp.where(key_idx < vl, s, jnp.float32(1e-6))      # module semantics: 1e-6, not -inf
        elif vl_mode == "vmem":
            vl = vl_ref[...]                                       # (TQ, 1) int32
            s = jnp.where(key_idx < vl, s, jnp.float32(1e-6))

        if needs_key_pad_mask:
            # zero-padded keys do not exist in the reference -> exclude them completely
            s = jnp.where(key_idx < k_orig, s, -jnp.inf)

        # Online softmax update (flash-style).
        m_prev = m_sc[...]
        m_new = jnp.maximum(m_prev, jnp.max(s, axis=-1, keepdims=True))
        alpha = jnp.exp(m_prev - m_new)
        p = jnp.exp(s - m_new)
        l_sc[...] = alpha * l_sc[...] + jnp.sum(p, axis=-1, keepdims=True)
        acc_sc[...] = alpha * acc_sc[...] + jnp.dot(
            p.astype(v_ref.dtype), v_ref[...], preferred_element_type=jnp.float32)
        m_sc[...] = m_new

        @pl.when(ki == pl.num_programs(2) - 1)
        def _finalize():
            l = l_sc[...]
            inv = pl.reciprocal(l, approx=True)   # EUP slot (frees VALU)
            inv = inv * (2.0 - l * inv)           # one Newton step -> ~f32 accuracy
            o_ref[...] = (acc_sc[...] * inv).astype(o_ref.dtype)

    return kernel


def dot_product_attention(queries, keys, values, valid_lens=None, *, tq=128, tk=256):
    """Pallas TPU forward of DotProductAttention (eval mode)."""
    queries = jnp.asarray(queries)
    keys = jnp.asarray(keys)
    values = jnp.asarray(values)

    B, Q, D = queries.shape
    _, K, _ = keys.shape
    Dv = values.shape[-1]
    out_dtype = jnp.result_type(queries.dtype, keys.dtype, values.dtype)

    # Tile sizes (clipped for small inputs) and lane/sublane-aligned padded extents.
    TQ = min(tq, _round_up(Q, 8))
    TK = min(tk, _round_up(K, 8))
    Q_pad = _round_up(Q, TQ)
    K_pad = _round_up(K, TK)
    D_pad = _round_up(D, 128)    # lane-dense contraction dim
    Dv_pad = _round_up(Dv, 128)  # lane-dense output dim -> unmasked vst

    def pad_to(x, shape):
        pads = [(0, t - s) for s, t in zip(x.shape, shape)]
        return jnp.pad(x, pads) if any(p[1] for p in pads) else x

    q_p = pad_to(queries, (B, Q_pad, D_pad))   # native dtype: no wrapper up-cast
    k_p = pad_to(keys, (B, K_pad, D_pad))
    v_p = pad_to(values, (B, K_pad, Dv_pad))

    grid = (B, Q_pad // TQ, K_pad // TK)
    scale = 1.0 / math.sqrt(D)

    extra_in_specs = []
    if valid_lens is None:
        vl_mode = "none"
        num_prefetch = 0
        args = (q_p, k_p, v_p)
    else:
        vl = jnp.asarray(valid_lens)
        if vl.ndim == 1:
            # (B,) int32 -> SMEM scalar prefetch; read per-batch scalar in the kernel.
            vl_mode = "smem"
            num_prefetch = 1
            args = (vl.astype(jnp.int32), q_p, k_p, v_p)
        else:
            # (B, Q) per-query lengths -> per-Q-tile VMEM block.
            vl_mode = "vmem"
            num_prefetch = 0
            vl2 = pad_to(vl.reshape(B, Q).astype(jnp.int32), (B, Q_pad))[..., None]
            args = (vl2, q_p, k_p, v_p)
            extra_in_specs = [pl.BlockSpec((None, TQ, 1), lambda b, qi, ki, *_: (b, qi, 0))]

    kernel = _make_kernel(scale=scale, k_orig=K, k_pad=K_pad, tk=TK, vl_mode=vl_mode)

    in_specs = extra_in_specs + [
        pl.BlockSpec((None, TQ, D_pad), lambda b, qi, ki, *_: (b, qi, 0)),   # q
        pl.BlockSpec((None, TK, D_pad), lambda b, qi, ki, *_: (b, ki, 0)),   # k
        pl.BlockSpec((None, TK, Dv_pad), lambda b, qi, ki, *_: (b, ki, 0)),  # v
    ]
    out_spec = pl.BlockSpec((None, TQ, Dv_pad), lambda b, qi, ki, *_: (b, qi, 0))

    grid_spec = pltpu.PrefetchScalarGridSpec(
        num_scalar_prefetch=num_prefetch,
        grid=grid,
        in_specs=in_specs,
        out_specs=out_spec,
        scratch_shapes=[
            pltpu.VMEM((TQ, 1), jnp.float32),        # running max m
            pltpu.VMEM((TQ, 1), jnp.float32),        # running denom l
            pltpu.VMEM((TQ, Dv_pad), jnp.float32),   # output accumulator
        ],
    )

    out = pl.pallas_call(
        kernel,
        out_shape=jax.ShapeDtypeStruct((B, Q_pad, Dv_pad), out_dtype),
        grid_spec=grid_spec,
        compiler_params=pltpu.CompilerParams(
            # B and Q-tile axes parallel (megacore / v7x 2 TCs), K reduction arbitrary.
            dimension_semantics=("parallel", "parallel", "arbitrary"),
            # Explicit, generation-safe scoped-VMEM budget (tiles use ~1-2 MiB).
            vmem_limit_bytes=32 * 1024 * 1024,
        ),
    )(*args)

    return out[:, :Q, :Dv]


def _reference(queries, keys, values, valid_lens=None):
    """Pure-JAX reference mirroring the PyTorch module (eval mode)."""
    B, Q, D = queries.shape
    K = keys.shape[1]
    scores = jnp.einsum("bqd,bkd->bqk", queries, keys) / math.sqrt(D)
    if valid_lens is not None:
        vl = jnp.asarray(valid_lens, dtype=jnp.float32)
        vl = jnp.broadcast_to(vl[:, None], (B, Q)) if vl.ndim == 1 else vl.reshape(B, Q)
        mask = jnp.arange(K, dtype=jnp.float32)[None, None, :] < vl[:, :, None]
        scores = jnp.where(mask, scores, 1e-6)
    w = jax.nn.softmax(scores, axis=-1)
    return jnp.einsum("bqk,bkv->bqv", w, values)


if __name__ == "__main__":
    key = jax.random.PRNGKey(0)
    k1, k2, k3 = jax.random.split(key, 3)

    # Small shapes consistent with the module.
    B, Q, K, D, Dv = 2, 8, 8, 32, 32
    queries = jax.random.normal(k1, (B, Q, D), dtype=jnp.float32)
    keys = jax.random.normal(k2, (B, K, D), dtype=jnp.float32)
    values = jax.random.normal(k3, (B, K, Dv), dtype=jnp.float32)
    valid_lens = jnp.array([3, 6], dtype=jnp.int32)   # 1-D valid_lens -> SMEM prefetch path

    out = dot_product_attention(queries, keys, values, valid_lens)
    jax.block_until_ready(out)
    ref = _reference(queries, keys, values, valid_lens)
    assert out.shape == (B, Q, Dv)
    assert jnp.allclose(out, ref, atol=1e-3, rtol=1e-3), float(jnp.max(jnp.abs(out - ref)))

    # valid_lens=None -> mask-free kernel variant.
    out2 = dot_product_attention(queries, keys, values, None)
    jax.block_until_ready(out2)
    assert jnp.allclose(out2, _reference(queries, keys, values, None), atol=1e-3, rtol=1e-3)

    # 2-D valid_lens (per-query lengths) -> VMEM mask path.
    vl2d = jnp.tile(jnp.array([[2, 3, 4, 5, 6, 7, 8, 8]], dtype=jnp.int32), (B, 1))
    out3 = dot_product_attention(queries, keys, values, vl2d)
    jax.block_until_ready(out3)
    assert jnp.allclose(out3, _reference(queries, keys, values, vl2d), atol=1e-3, rtol=1e-3)

    # Multi-tile case: 2 Q tiles, 2 K tiles, padded last K tile (small tiles to stay fast).
    B2, Q2, K2, D2, Dv2 = 2, 96, 200, 32, 48
    kq, kk, kv = jax.random.split(jax.random.PRNGKey(1), 3)
    q_l = jax.random.normal(kq, (B2, Q2, D2), dtype=jnp.float32)
    k_l = jax.random.normal(kk, (B2, K2, D2), dtype=jnp.float32)
    v_l = jax.random.normal(kv, (B2, K2, Dv2), dtype=jnp.float32)
    vl_l = jnp.array([77, 200], dtype=jnp.int32)
    out4 = dot_product_attention(q_l, k_l, v_l, vl_l, tq=64, tk=128)
    jax.block_until_ready(out4)
    ref4 = _reference(q_l, k_l, v_l, vl_l)
    assert out4.shape == (B2, Q2, Dv2)
    assert jnp.allclose(out4, ref4, atol=1e-3, rtol=1e-3), float(jnp.max(jnp.abs(out4 - ref4)))

    print("KERNEL_OK")
</pallas_src>

<mosaic_0001>
module attributes {stable_mosaic.version = 11 : i64} {
  func.func @kernel(%arg0: i32, %arg1: i32, %arg2: i32, %arg3: memref<2xi32, #tpu.memory_space<smem>>, %arg4: memref<1x8x128xf32, #tpu.memory_space<vmem>>, %arg5: memref<1x8x128xf32, #tpu.memory_space<vmem>>, %arg6: memref<1x8x128xf32, #tpu.memory_space<vmem>>, %arg7: memref<1x8x128xf32, #tpu.memory_space<vmem>>, %arg8: memref<8x1xf32, #tpu.memory_space<vmem>>, %arg9: memref<8x1xf32, #tpu.memory_space<vmem>>, %arg10: memref<8x128xf32, #tpu.memory_space<vmem>>) attributes {dimension_semantics = [#tpu.dimension_semantics<parallel>, #tpu.dimension_semantics<parallel>, #tpu.dimension_semantics<arbitrary>], iteration_bounds = array<i64: 2, 1, 1>, scalar_prefetch = 1 : i64, scratch_operands = 3 : i64, tpu.core_type = #tpu.core_type<tc>, window_params = [{transform_indices = @transform_0, window_bounds = array<i64: 1, 8, 128>}, {transform_indices = @transform_1, window_bounds = array<i64: 1, 8, 128>}, {transform_indices = @transform_2, window_bounds = array<i64: 1, 8, 128>}, {transform_indices = @transform_3, window_bounds = array<i64: 1, 8, 128>}]} {
    %c0_i32 = arith.constant 0 : i32
    %0 = arith.cmpi eq, %arg2, %c0_i32 : i32
    %1 = arith.extui %0 : i1 to i32
    %c0_i32_0 = arith.constant 0 : i32
    %2 = arith.cmpi ne, %1, %c0_i32_0 : i32
    scf.if %2 {
      %cst_28 = arith.constant 0xFF800000 : f32
      %47 = vector.broadcast %cst_28 : f32 to vector<8x1xf32>
      %c0_29 = arith.constant 0 : index
      %c0_30 = arith.constant 0 : index
      %48 = vector.load %arg8[%c0_29, %c0_30] : memref<8x1xf32, #tpu.memory_space<vmem>>, vector<8x1xf32>
      tpu.vector_store %arg8[%c0_29, %c0_30], %47 {strides = array<i32>} : memref<8x1xf32, #tpu.memory_space<vmem>>, vector<8x1xf32>,
      %cst_31 = arith.constant 0.000000e+00 : f32
      %49 = vector.broadcast %cst_31 : f32 to vector<8x1xf32>
      %c0_32 = arith.constant 0 : index
      %c0_33 = arith.constant 0 : index
      %50 = vector.load %arg9[%c0_32, %c0_33] : memref<8x1xf32, #tpu.memory_space<vmem>>, vector<8x1xf32>
      tpu.vector_store %arg9[%c0_32, %c0_33], %49 {strides = array<i32>} : memref<8x1xf32, #tpu.memory_space<vmem>>, vector<8x1xf32>,
      %cst_34 = arith.constant 0.000000e+00 : f32
      %51 = vector.broadcast %cst_34 : f32 to vector<8x128xf32>
      %c0_35 = arith.constant 0 : index
      %c0_36 = arith.constant 0 : index
      %52 = vector.load %arg10[%c0_35, %c0_36] : memref<8x128xf32, #tpu.memory_space<vmem>>, vector<8x128xf32>
      tpu.vector_store %arg10[%c0_35, %c0_36], %51 {strides = array<i32>} : memref<8x128xf32, #tpu.memory_space<vmem>>, vector<8x128xf32>,
    } else {
    }
    %c0 = arith.constant 0 : index
    %c0_1 = arith.constant 0 : index
    %c0_2 = arith.constant 0 : index
    %3 = vector.load %arg4[%c0, %c0_1, %c0_2] : memref<1x8x128xf32, #tpu.memory_space<vmem>>, vector<1x8x128xf32>
    %4 = vector.shape_cast %3 : vector<1x8x128xf32> to vector<8x128xf32>
    %cst = arith.constant 0.176776692 : f32
    %5 = vector.broadcast %cst : f32 to vector<8x128xf32>
    %6 = arith.mulf %4, %5 : vector<8x128xf32>
    %c0_3 = arith.constant 0 : index
    %c0_4 = arith.constant 0 : index
    %c0_5 = arith.constant 0 : index
    %7 = vector.load %arg5[%c0_3, %c0_4, %c0_5] : memref<1x8x128xf32, #tpu.memory_space<vmem>>, vector<1x8x128xf32>
    %8 = vector.shape_cast %7 : vector<1x8x128xf32> to vector<8x128xf32>
    %cst_6 = arith.constant dense<0.000000e+00> : vector<8x8xf32>
    %9 = tpu.matmul %6, %8, %cst_6 {dimension_numbers = #tpu.dot_dimension_numbers<[1], [1], [0], [0], [0, 0, 1, 0], [], []>} : vector<8x128xf32>, vector<8x128xf32>, vector<8x8xf32> -> vector<8x8xf32>
    %c8_i32 = arith.constant 8 : i32
    %10 = arith.muli %c8_i32, %arg2 : i32
    %11 = tpu.iota {dimensions = array<i32: 1>} : vector<8x8xi32>
    %12 = vector.broadcast %10 : i32 to vector<8x8xi32>
    %13 = arith.addi %12, %11 : vector<8x8xi32>
    %14 = arith.index_cast %arg0 : i32 to index
    %15 = memref.load %arg3[%14] : memref<2xi32, #tpu.memory_space<smem>>
    %16 = vector.broadcast %15 : i32 to vector<8x8xi32>
    %17 = arith.cmpi slt, %13, %16 : vector<8x8xi32>
    %cst_7 = arith.constant 9.99999997E-7 : f32
    %18 = vector.broadcast %cst_7 : f32 to vector<8x8xf32>
    %19 = arith.select %17, %9, %18 : vector<8x8xi1>, vector<8x8xf32>
    %c0_8 = arith.constant 0 : index
    %c0_9 = arith.constant 0 : index
    %20 = vector.load %arg8[%c0_8, %c0_9] : memref<8x1xf32, #tpu.memory_space<vmem>>, vector<8x1xf32>
    %cst_10 = arith.constant dense<0xFF800000> : vector<8xf32>
    %21 = vector.multi_reduction <maximumf>, %19, %cst_10 [1] : vector<8x8xf32> to vector<8xf32>
    %22 = vector.shape_cast %21 : vector<8xf32> to vector<8x1xf32>
    %23 = arith.maximumf %20, %22 : vector<8x1xf32>
    %24 = arith.subf %20, %23 : vector<8x1xf32>
    %25 = math.exp %24 : vector<8x1xf32>
    %26 = vector.broadcast %23 : vector<8x1xf32> to vector<8x8xf32>
    %27 = arith.subf %19, %26 : vector<8x8xf32>
    %28 = math.exp %27 : vector<8x8xf32>
    %c0_11 = arith.constant 0 : index
    %c0_12 = arith.constant 0 : index
    %29 = vector.load %arg9[%c0_11, %c0_12] : memref<8x1xf32, #tpu.memory_space<vmem>>, vector<8x1xf32>
    %30 = arith.mulf %25, %29 : vector<8x1xf32>
    %cst_13 = arith.constant dense<0.000000e+00> : vector<8xf32>
    %31 = vector.multi_reduction <add>, %28, %cst_13 [1] : vector<8x8xf32> to vector<8xf32>
    %32 = vector.shape_cast %31 : vector<8xf32> to vector<8x1xf32>
    %33 = arith.addf %30, %32 : vector<8x1xf32>
    %c0_14 = arith.constant 0 : index
    %c0_15 = arith.constant 0 : index
    %34 = vector.load %arg9[%c0_14, %c0_15] : memref<8x1xf32, #tpu.memory_space<vmem>>, vector<8x1xf32>
    tpu.vector_store %arg9[%c0_14, %c0_15], %33 {strides = array<i32>} : memref<8x1xf32, #tpu.memory_space<vmem>>, vector<8x1xf32>,
    %c0_16 = arith.constant 0 : index
    %c0_17 = arith.constant 0 : index
    %35 = vector.load %arg10[%c0_16, %c0_17] : memref<8x128xf32, #tpu.memory_space<vmem>>, vector<8x128xf32>
    %36 = vector.broadcast %25 : vector<8x1xf32> to vector<8x128xf32>
    %37 = arith.mulf %36, %35 : vector<8x128xf32>
    %c0_18 = arith.constant 0 : index
    %c0_19 = arith.constant 0 : index
    %c0_20 = arith.constant 0 : index
    %38 = vector.load %arg6[%c0_18, %c0_19, %c0_20] : memref<1x8x128xf32, #tpu.memory_space<vmem>>, vector<1x8x128xf32>
    %39 = vector.shape_cast %38 : vector<1x8x128xf32> to vector<8x128xf32>
    %cst_21 = arith.constant dense<0.000000e+00> : vector<8x128xf32>
    %40 = tpu.matmul %28, %39, %cst_21 {dimension_numbers = #tpu.dot_dimension_numbers<[1], [0], [0], [1], [0, 0, 1, 1], [], []>} : vector<8x8xf32>, vector<8x128xf32>, vector<8x128xf32> -> vector<8x128xf32>
    %41 = arith.addf %37, %40 : vector<8x128xf32>
    %c0_22 = arith.constant 0 : index
    %c0_23 = arith.constant 0 : index
    %42 = vector.load %arg10[%c0_22, %c0_23] : memref<8x128xf32, #tpu.memory_space<vmem>>, vector<8x128xf32>
    tpu.vector_store %arg10[%c0_22, %c0_23], %41 {strides = array<i32>} : memref<8x128xf32, #tpu.memory_space<vmem>>, vector<8x128xf32>,
    %c0_24 = arith.constant 0 : index
    %c0_25 = arith.constant 0 : index
    %43 = vector.load %arg8[%c0_24, %c0_25] : memref<8x1xf32, #tpu.memory_space<vmem>>, vector<8x1xf32>
    tpu.vector_store %arg8[%c0_24, %c0_25], %23 {strides = array<i32>} : memref<8x1xf32, #tpu.memory_space<vmem>>, vector<8x1xf32>,
    %c0_i32_26 = arith.constant 0 : i32
    %44 = arith.cmpi eq, %arg2, %c0_i32_26 : i32
    %45 = arith.extui %44 : i1 to i32
    %c0_i32_27 = arith.constant 0 : i32
    %46 = arith.cmpi ne, %45, %c0_i32_27 : i32
    scf.if %46 {
      %c0_28 = arith.constant 0 : index
      %c0_29 = arith.constant 0 : index
      %47 = vector.load %arg9[%c0_28, %c0_29] : memref<8x1xf32, #tpu.memory_space<vmem>>, vector<8x1xf32>
      %48 = tpu.reciprocal %47 {approx = true} : vector<8x1xf32> -> vector<8x1xf32>
      %49 = arith.mulf %47, %48 : vector<8x1xf32>
      %cst_30 = arith.constant 2.000000e+00 : f32
      %50 = vector.broadcast %cst_30 : f32 to vector<8x1xf32>
      %51 = arith.subf %50, %49 : vector<8x1xf32>
      %52 = arith.mulf %48, %51 : vector<8x1xf32>
      %c0_31 = arith.constant 0 : index
      %c0_32 = arith.constant 0 : index
      %53 = vector.load %arg10[%c0_31, %c0_32] : memref<8x128xf32, #tpu.memory_space<vmem>>, vector<8x128xf32>
      %54 = vector.broadcast %52 : vector<8x1xf32> to vector<8x128xf32>
      %55 = arith.mulf %53, %54 : vector<8x128xf32>
      %c0_33 = arith.constant 0 : index
      %c0_34 = arith.constant 0 : index
      %c0_35 = arith.constant 0 : index
      %56 = vector.load %arg7[%c0_33, %c0_34, %c0_35] : memref<1x8x128xf32, #tpu.memory_space<vmem>>, vector<1x8x128xf32>
      %57 = vector.shape_cast %56 : vector<1x8x128xf32> to vector<8x128xf32>
      %58 = vector.shape_cast %55 : vector<8x128xf32> to vector<1x8x128xf32>
      tpu.vector_store %arg7[%c0_33, %c0_34, %c0_35], %58 {strides = array<i32>} : memref<1x8x128xf32, #tpu.memory_space<vmem>>, vector<1x8x128xf32>,
    } else {
    }
    return
  }
  func.func @transform_0(%arg0: i32, %arg1: i32, %arg2: i32, %arg3: memref<2xi32, #tpu.memory_space<smem>>) -> (i32, i32, i32) {
    %c0_i32 = arith.constant 0 : i32
    %c0_i32_0 = arith.constant 0 : i32
    return %arg0, %arg1, %c0_i32 : i32, i32, i32
  }
  func.func @transform_1(%arg0: i32, %arg1: i32, %arg2: i32, %arg3: memref<2xi32, #tpu.memory_space<smem>>) -> (i32, i32, i32) {
    %c0_i32 = arith.constant 0 : i32
    %c0_i32_0 = arith.constant 0 : i32
    return %arg0, %arg2, %c0_i32 : i32, i32, i32
  }
  func.func @transform_2(%arg0: i32, %arg1: i32, %arg2: i32, %arg3: memref<2xi32, #tpu.memory_space<smem>>) -> (i32, i32, i32) {
    %c0_i32 = arith.constant 0 : i32
    %c0_i32_0 = arith.constant 0 : i32
    return %arg0, %arg2, %c0_i32 : i32, i32, i32
  }
  func.func @transform_3(%arg0: i32, %arg1: i32, %arg2: i32, %arg3: memref<2xi32, #tpu.memory_space<smem>>) -> (i32, i32, i32) {
    %c0_i32 = arith.constant 0 : i32
    %c0_i32_0 = arith.constant 0 : i32
    return %arg0, %arg1, %c0_i32 : i32, i32, i32
  }
}

</mosaic_0001>

<llo_original>
// kernel: tpu_custom_call.1
$region0: #{tpu_custom_call.1}
  #allocation0 [shape = 'u32[]', space=smem, size = 0x4, offset = 0x4, fixed_abs, tag = 'smem constant byte address 0x4 - core index']
  #allocation1 [shape = 'u32[144,128]{1,0:T(1,128)}', space=vmem, size = 0x12000, scoped, tag = 'internal scratch']
  #allocation2 [shape = 'f32[8,1]{1,0:T(8,128)}', space=vmem, size = 0x1000, scoped, tag = 'scratch operand']
  #allocation3 [shape = 'f32[8,1]{1,0:T(8,128)}', space=vmem, size = 0x1000, scoped, tag = 'scratch operand']
  #allocation4 [shape = 'f32[8,128]{1,0:T(8,128)}', space=vmem, size = 0x1000, scoped, tag = 'scratch operand']
  #allocation5 [shape = 's32[1]{0}', space=sflag, size = 0x4, scoped, tag = 'scoped memory for tpu_custom_call.1']
  #allocation6 [shape = 'u8[512]{0}', space=smem, size = 0x200, scoped, tag = 'prefetched SMEM operand 0']
  %s0 = inlined_call_operand.hbm [shape: s32[2], index: 0, kind: input, shape index: {}]
  %s1 = inlined_call_operand.hbm [shape: f32[2,8,128], index: 1, kind: input, shape index: {}]
  %s2 = inlined_call_operand.hbm [shape: f32[2,8,128], index: 2, kind: input, shape index: {}]
  %s3 = inlined_call_operand.hbm [shape: f32[2,8,128], index: 3, kind: input, shape index: {}]
  %s4 = inlined_call_operand.hbm [shape: f32[2,8,128], index: 4, kind: output, shape index: {}]
  %s5 = sld [smem:[#allocation0]]
  $region65: #{tpu_custom_call.1} parent=0
    _
  %s7 = ssub.s32 1, %s5
  %s8 = scalar_select 0, %s7, %s5
  %10 = dma.hbm_to_smem %s0, 16, [#allocation6], [#allocation5]
  %11 = dma.done [#allocation5], 16
  %12 = sfence
  $region1: #{tpu_custom_call.1} parent=0
    #allocation7 [shape = 'u8[8192]{0}', space=vmem, size = 0x2000, scoped, tag = 'input window, operand 1']
    #allocation8 [shape = 's32[2]{0}', space=sflag, size = 0x8, scoped, tag = 'scoped memory for tpu_custom_call.1']
    #allocation9 [shape = 's32[2]{0}', space=sflag, size = 0x8, scoped, tag = 'scoped memory for tpu_custom_call.1']
    #allocation10 [shape = 'u8[8192]{0}', space=vmem, size = 0x2000, scoped, tag = 'input window, operand 2']
    #allocation11 [shape = 's32[2]{0}', space=sflag, size = 0x8, scoped, tag = 'scoped memory for tpu_custom_call.1']
    #allocation12 [shape = 'u8[8192]{0}', space=vmem, size = 0x2000, scoped, tag = 'input window, operand 3']
    #allocation13 [shape = 'u8[8192]{0}', space=vmem, size = 0x2000, scoped, tag = 'output window, operand 0']
    %13 = vsyncpa [#allocation8], 0
    %s14 = scalar_lea.sflag [#allocation8], 1
    %15 = vsyncpa %s14, 0
    %16 = vsyncpa [#allocation11], 0
    %s17 = scalar_lea.sflag [#allocation11], 1
    %18 = vsyncpa %s17, 0
    %19 = vsyncpa [#allocation9], 0
    %s20 = scalar_lea.sflag [#allocation9], 1
    %21 = vsyncpa %s20, 0
    loop: start=0, step=1, limit=4
    $region2: #{tpu_custom_call.1} parent=1 // loop_pre_header
      _
    $region3: #{tpu_custom_call.1} parent=1 // loop_header
      %s23 = sphi 0, %s27
      %p24 = scmp.ge.s32.totalorder %s23, 4
      %s30 = sphi 0, %s49
      %s31 = sphi 0, %s45
      %s32 = sphi 0, %s41
      %s33 = sphi 0, %s30
      %s34 = sphi 0, %s31
      %s35 = sphi 0, %s32
      %s36 = sphi 0, %s33
      %s37 = sphi 0, %s34
      %s38 = sphi 0, %s35
      %s54 = sphi 0, %s56
      %s57 = sphi 0, %s54
      %s58 = sphi 0, %s57
      %s74 = sphi 0, %s58
      %s82 = sphi 0, %s84
      %s85 = sphi 0, %s82
      %s86 = sphi 0, %s85
      %s102 = sphi 0, %s86
      %s110 = sphi 0, %s112
      %s113 = sphi 0, %s110
      %s114 = sphi 0, %s113
      %s130 = sphi 0, %s114
      %s138 = sphi 0, %s140
      %s141 = sphi 0, %s138
      %s142 = sphi 0, %s141
      %s158 = sphi 0, %s142
    $region4: #{tpu_custom_call.1} parent=1 // loop_header_branch
      %26 = sbr.rel (%p24) target = $region8
    $region5: #{tpu_custom_call.1} parent=1 // loop_body
      %s28 = ssub.s32 %s23, 1
      %s29 = ssub.s32 %s23, 2
      %s39 = sadd.s32 1, %s32
      %p40 = scmp.ge.s32.totalorder %s39, 1
      %s41 = scalar_select %p40, 0, %s39
      %s42 = sadd.s32 1, %s31
      %s43 = scalar_select %p40, %s42, %s31
      %p44 = scmp.ge.s32.totalorder %s43, 1
      %s45 = scalar_select %p44, 0, %s43
      %s46 = sadd.s32 1, %s30
      %s47 = scalar_select %p44, %s46, %s30
      %p48 = scmp.ge.s32.totalorder %s47, 2
      %s49 = scalar_select %p48, 0, %s47
      %s50 = ssub.s32 %s30, %s49
      %s51 = ssub.s32 %s31, %s45
      %s52 = sor.u32 %s50, %s51
      %p53 = scmp.eq.s32.totalorder %s52, 0
      %s55 = sadd.s32 %s54, 1
      %s56 = scalar_select %p53, %s54, %s55
      %p59 = pneg %p53
      %p60 = scmp.eq.s32.totalorder %s23, 1
      %p61 = por %p59, %p60
      %p62 = scmp.ne.s32.totalorder %s54, %s57
      %p63 = scmp.eq.s32.totalorder %s23, 0
      %p64 = por %p62, %p63
      %p65 = scmp.ne.s32.totalorder %s54, %s57
      %p66 = scmp.eq.s32.totalorder %s28, 1
      %p67 = por %p65, %p66
      %p68 = scmp.ne.s32.totalorder %s57, %s58
      %p69 = scmp.eq.s32.totalorder %s28, 0
      %p70 = por %p68, %p69
      %p71 = scmp.ne.s32.totalorder %s57, %s58
      %p72 = scmp.eq.s32.totalorder %s29, 1
      %p73 = por %p71, %p72
      %p75 = scmp.ne.s32.totalorder %s58, %s74
      %p76 = scmp.eq.s32.totalorder %s29, 0
      %p77 = por %p75, %p76
      %s78 = ssub.s32 %s30, %s49
      %s79 = ssub.s32 %s32, %s41
      %s80 = sor.u32 %s78, %s79
      %p81 = scmp.eq.s32.totalorder %s80, 0
      %s83 = sadd.s32 %s82, 1
      %s84 = scalar_select %p81, %s82, %s83
      %p87 = pneg %p81
      %p88 = scmp.eq.s32.totalorder %s23, 1
      %p89 = por %p87, %p88
      %p90 = scmp.ne.s32.totalorder %s82, %s85
      %p91 = scmp.eq.s32.totalorder %s23, 0
      %p92 = por %p90, %p91
      %p93 = scmp.ne.s32.totalorder %s82, %s85
      %p94 = scmp.eq.s32.totalorder %s28, 1
      %p95 = por %p93, %p94
      %p96 = scmp.ne.s32.totalorder %s85, %s86
      %p97 = scmp.eq.s32.totalorder %s28, 0
      %p98 = por %p96, %p97
      %p99 = scmp.ne.s32.totalorder %s85, %s86
      %p100 = scmp.eq.s32.totalorder %s29, 1
      %p101 = por %p99, %p100
      %p103 = scmp.ne.s32.totalorder %s86, %s102
      %p104 = scmp.eq.s32.totalorder %s29, 0
      %p105 = por %p103, %p104
      %s106 = ssub.s32 %s30, %s49
      %s107 = ssub.s32 %s32, %s41
      %s108 = sor.u32 %s106, %s107
      %p109 = scmp.eq.s32.totalorder %s108, 0
      %s111 = sadd.s32 %s110, 1
      %s112 = scalar_select %p109, %s110, %s111
      %p115 = pneg %p109
      %p116 = scmp.eq.s32.totalorder %s23, 1
      %p117 = por %p115, %p116
      %p118 = scmp.ne.s32.totalorder %s110, %s113
      %p119 = scmp.eq.s32.totalorder %s23, 0
      %p120 = por %p118, %p119
      %p121 = scmp.ne.s32.totalorder %s110, %s113
      %p122 = scmp.eq.s32.totalorder %s28, 1
      %p123 = por %p121, %p122
      %p124 = scmp.ne.s32.totalorder %s113, %s114
      %p125 = scmp.eq.s32.totalorder %s28, 0
      %p126 = por %p124, %p125
      %p127 = scmp.ne.s32.totalorder %s113, %s114
      %p128 = scmp.eq.s32.totalorder %s29, 1
      %p129 = por %p127, %p128
      %p131 = scmp.ne.s32.totalorder %s114, %s130
      %p132 = scmp.eq.s32.totalorder %s29, 0
      %p133 = por %p131, %p132
      %s134 = ssub.s32 %s30, %s49
      %s135 = ssub.s32 %s31, %s45
      %s136 = sor.u32 %s134, %s135
      %p137 = scmp.eq.s32.totalorder %s136, 0
      %s139 = sadd.s32 %s138, 1
      %s140 = scalar_select %p137, %s138, %s139
      %p143 = pneg %p137
      %p144 = scmp.eq.s32.totalorder %s23, 1
      %p145 = por %p143, %p144
      %p146 = scmp.ne.s32.totalorder %s138, %s141
      %p147 = scmp.eq.s32.totalorder %s23, 0
      %p148 = por %p146, %p147
      %p149 = scmp.ne.s32.totalorder %s138, %s141
      %p150 = scmp.eq.s32.totalorder %s28, 1
      %p151 = por %p149, %p150
      %p152 = scmp.ne.s32.totalorder %s141, %s142
      %p153 = scmp.eq.s32.totalorder %s28, 0
      %p154 = por %p152, %p153
      %p155 = scmp.ne.s32.totalorder %s141, %s142
      %p156 = scmp.eq.s32.totalorder %s29, 1
      %p157 = por %p155, %p156
      %p159 = scmp.ne.s32.totalorder %s142, %s158
      %p160 = scmp.eq.s32.totalorder %s29, 0
      %p161 = por %p159, %p160
      %p162 = scmp.le.s32.totalorder 1, %s23
      %p163 = scmp.lt.s32.totalorder %s23, 3
      %p164 = pnand %p162, %p163
      %p165 = pneg %p164
      // Predicated region
      $region9: #{tpu_custom_call.1} parent=5 // pred_check
        _
      $region10: #{tpu_custom_call.1} parent=5 // pred_check_branch
        %167 = sbr.rel (%p164) target = $region12
      $region11: #{tpu_custom_call.1} parent=5 // pred_region
        %s168 = ssub.s32 %s23, 1
      $region12: #{tpu_custom_call.1} parent=5 // pred_fallthru
        _
      %p169 = scmp.lt.s32.totalorder %s23, 2
      // Predicated region
      $region13: #{tpu_custom_call.1} parent=5 // pred_check
        %p170 = pneg %p169
      $region14: #{tpu_custom_call.1} parent=5 // pred_check_branch
        %172 = sbr.rel (%p170) target = $region16
      $region15: #{tpu_custom_call.1} parent=5 // pred_region
        // Predicated region
        $region17: #{tpu_custom_call.1} parent=15 // pred_check
          %p173 = pneg %p64
        $region18: #{tpu_custom_call.1} parent=15 // pred_check_branch
          %175 = sbr.rel (%p173) target = $region20
        $region19: #{tpu_custom_call.1} parent=15 // pred_region
          %s176 = sand.u32 %s54, 1
          %s177 = scalar_lea.sflag [#allocation8], %s176
          %s178 = sand.u32 %s54, 1
          %s179 = smul.addr %s178, 8
          %s180 = scalar_lea.vmem [#allocation7], %s179
          %s182 = ssub.s32 128, 128
          %183 = vsyncadd %s177, %s182
          %s184 = sadd.s32 %s31, %s30
          %s185 = smul.addr %s184, 128
          %s186 = scalar_lea.hbm %s1, %s185
          %s188 = sshll.u32 %s180, 4
          %s189 = int_to_ptr.vmem [resolvable:$true] %s188
          %191 = dma.hbm_to_vmem [thread:$0]  %s186, 128, %s189, %s177
        $region20: #{tpu_custom_call.1} parent=15 // pred_fallthru
          _
        // Predicated region
        $region21: #{tpu_custom_call.1} parent=15 // pred_check
          %p192 = pneg %p92
        $region22: #{tpu_custom_call.1} parent=15 // pred_check_branch
          %194 = sbr.rel (%p192) target = $region24
        $region23: #{tpu_custom_call.1} parent=15 // pred_region
          %s195 = sand.u32 %s23, 1
          %s196 = scalar_lea.sflag [#allocation11], %s195
          %s197 = sand.u32 %s82, 1
          %s198 = smul.addr %s197, 8
          %s199 = scalar_lea.vmem [#allocation10], %s198
          %s201 = ssub.s32 128, 128
          %202 = vsyncadd %s196, %s201
          %s203 = sadd.s32 %s32, %s30
          %s204 = smul.addr %s203, 128
          %s205 = scalar_lea.hbm %s2, %s204
          %s207 = sshll.u32 %s199, 4
          %s208 = int_to_ptr.vmem [resolvable:$true] %s207
          %210 = dma.hbm_to_vmem [thread:$0]  %s205, 128, %s208, %s196
        $region24: #{tpu_custom_call.1} parent=15 // pred_fallthru
          _
        // Predicated region
        $region25: #{tpu_custom_call.1} parent=15 // pred_check
          %p211 = pneg %p120
        $region26: #{tpu_custom_call.1} parent=15 // pred_check_branch
          %213 = sbr.rel (%p211) target = $region28
        $region27: #{tpu_custom_call.1} parent=15 // pred_region
          %s214 = sand.u32 %s23, 1
          %s215 = scalar_lea.sflag [#allocation11], %s214
          %s216 = sand.u32 %s110, 1
          %s217 = smul.addr %s216, 8
          %s218 = scalar_lea.vmem [#allocation12], %s217
          %s220 = ssub.s32 128, 128
          %221 = vsyncadd %s215, %s220
          %s222 = sadd.s32 %s32, %s30
          %s223 = smul.addr %s222, 128
          %s224 = scalar_lea.hbm %s3, %s223
          %s226 = sshll.u32 %s218, 4
          %s227 = int_to_ptr.vmem [resolvable:$true] %s226
          %229 = dma.hbm_to_vmem [thread:$0]  %s224, 128, %s227, %s215
        $region28: #{tpu_custom_call.1} parent=15 // pred_fallthru
          _
      $region16: #{tpu_custom_call.1} parent=5 // pred_fallthru
        _
      %p230 = scmp.le.s32.totalorder 1, %s23
      %p231 = scmp.lt.s32.totalorder %s23, 3
      %p232 = pnand %p230, %p231
      %p233 = pneg %p232
      // Predicated region
      $region29: #{tpu_custom_call.1} parent=5 // pred_check
        _
      $region30: #{tpu_custom_call.1} parent=5 // pred_check_branch
        %235 = sbr.rel (%p232) target = $region32
      $region31: #{tpu_custom_call.1} parent=5 // pred_region
        %s236 = ssub.s32 %s23, 1
        %s237 = sand.u32 %s57, 1
        %s238 = scalar_lea.sflag [#allocation8], %s237
        %s239 = sand.u32 %s57, 1
        %s240 = smul.addr %s239, 8
        %s241 = scalar_lea.vmem [#allocation7], %s240
        // Predicated region
        $region33: #{tpu_custom_call.1} parent=31 // pred_check
          %p242 = pneg %p70
        $region34: #{tpu_custom_call.1} parent=31 // pred_check_branch
          %244 = sbr.rel (%p242) target = $region36
        $region35: #{tpu_custom_call.1} parent=31 // pred_region
          %245 = dma.done %s238, 128
        $region36: #{tpu_custom_call.1} parent=31 // pred_fallthru
          _
        %s246 = sand.u32 %s28, 1
        %s247 = scalar_lea.sflag [#allocation11], %s246
        %s248 = sand.u32 %s85, 1
        %s249 = smul.addr %s248, 8
        %s250 = scalar_lea.vmem [#allocation10], %s249
        // Predicated region
        $region37: #{tpu_custom_call.1} parent=31 // pred_check
          %p251 = pneg %p98
        $region38: #{tpu_custom_call.1} parent=31 // pred_check_branch
          %253 = sbr.rel (%p251) target = $region40
        $region39: #{tpu_custom_call.1} parent=31 // pred_region
          %254 = dma.done %s247, 128
        $region40: #{tpu_custom_call.1} parent=31 // pred_fallthru
          _
        %s255 = sand.u32 %s28, 1
        %s256 = scalar_lea.sflag [#allocation11], %s255
        %s257 = sand.u32 %s113, 1
        %s258 = smul.addr %s257, 8
        %s259 = scalar_lea.vmem [#allocation12], %s258
        // Predicated region
        $region41: #{tpu_custom_call.1} parent=31 // pred_check
          %p260 = pneg %p126
        $region42: #{tpu_custom_call.1} parent=31 // pred_check_branch
          %262 = sbr.rel (%p260) target = $region44
        $region43: #{tpu_custom_call.1} parent=31 // pred_region
          %263 = dma.done %s256, 128
        $region44: #{tpu_custom_call.1} parent=31 // pred_fallthru
          _
        %s264 = sand.u32 %s57, 1
        %s265 = scalar_lea.sflag [#allocation8], %s264
        %s266 = sand.u32 %s57, 1
        %s267 = smul.addr %s266, 8
        %s268 = scalar_lea.vmem [#allocation7], %s267
        %p269 = pneg %p70
        %p270 = pneg %p67
        %s271 = sand.u32 %s28, 1
        %s272 = scalar_lea.sflag [#allocation11], %s271
        %s273 = sand.u32 %s85, 1
        %s274 = smul.addr %s273, 8
        %s275 = scalar_lea.vmem [#allocation10], %s274
        %p276 = pneg %p98
        %p277 = pneg %p95
        %s278 = sand.u32 %s28, 1
        %s279 = scalar_lea.sflag [#allocation11], %s278
        %s280 = sand.u32 %s113, 1
        %s281 = smul.addr %s280, 8
        %s282 = scalar_lea.vmem [#allocation12], %s281
        %p283 = pneg %p126
        %p284 = pneg %p123
        %p285 = pneg %p154
        %p286 = pneg %p151
        %s287 = sand.u32 %s141, 1
        %s288 = scalar_lea.sflag [#allocation9], %s287
        %s289 = sand.u32 %s141, 1
        %s290 = smul.addr %s289, 8
        %s291 = scalar_lea.vmem [#allocation13], %s290
        %p292 = scmp.eq.s32.totalorder %s35, 0
        // Predicated region
        $region45: #{tpu_custom_call.1} parent=31 // pred_check
          %p293 = pneg %p292
        $region46: #{tpu_custom_call.1} parent=31 // pred_check_branch
          %295 = sbr.rel (%p293) target = $region48
        $region47: #{tpu_custom_call.1} parent=31 // pred_region
          %vm296 = vcmask 7168
          %297 = vst.msk [vmem:[#allocation2] sm:$0xff] %vm296, -inf
          %298 = vst.msk [vmem:[#allocation3] sm:$0xff] %vm296, 0.0
          %299 = vst [vmem:[#allocation4] sm:$0xff] 0.0
        $region48: #{tpu_custom_call.1} parent=31 // pred_fallthru
          _
        %v300 = vld [vmem:[%s241] sm:$0xff]
        %v301 = vmul.f32 %v300, 0.17677669
        %v302 = vld [vmem:[%s250] sm:$0xff]
        %303 = vmatprep.subr.mxu0 0.0
        %304 = vmatpush1.xpose.msra.mxu0 %v302
        %305 = vmatprep.subr.mxu0 0.0
        %306 = vmatpush1.xpose.msra.mxu0 0.0
        %307 = vmatprep.subr.mxu0 0.0
        %308 = vmatpush1.xpose.msra.mxu0 0.0
        %309 = vmatprep.subr.mxu0 0.0
        %310 = vmatpush1.xpose.msra.mxu0 0.0
        %311 = vmatprep.subr.mxu0 0.0
        %312 = vmatpush1.xpose.msra.mxu0 0.0
        %313 = vmatprep.subr.mxu0 0.0
        %314 = vmatpush1.xpose.msra.mxu0 0.0
        %315 = vmatprep.subr.mxu0 0.0
        %316 = vmatpush1.xpose.msra.mxu0 0.0
        %317 = vmatprep.subr.mxu0 0.0
        %318 = vmatpush1.xpose.msra.mxu0 0.0
        %319 = vmatprep.subr.mxu0 0.0
        %320 = vmatpush1.xpose.msra.mxu0 0.0
        %321 = vmatprep.subr.mxu0 0.0
        %322 = vmatpush1.xpose.msra.mxu0 0.0
        %323 = vmatprep.subr.mxu0 0.0
        %324 = vmatpush1.xpose.msra.mxu0 0.0
        %325 = vmatprep.subr.mxu0 0.0
        %326 = vmatpush1.xpose.msra.mxu0 0.0
        %327 = vmatprep.subr.mxu0 0.0
        %328 = vmatpush1.xpose.msra.mxu0 0.0
        %329 = vmatprep.subr.mxu0 0.0
        %330 = vmatpush1.xpose.msra.mxu0 0.0
        %331 = vmatprep.subr.mxu0 0.0
        %332 = vmatpush1.xpose.msra.mxu0 0.0
        %333 = vmatprep.subr.mxu0 0.0
        %334 = vmatpush1.xpose.msra.mxu0 0.0
        %335 = vmatprep.subr.mxu0 0.0
        %336 = vmatpush1.xpose.msra.mxu0 0.0
        %337 = vmatprep.subr.mxu0 0.0
        %338 = vmatpush1.xpose.msra.mxu0 0.0
        %339 = vmatprep.subr.mxu0 0.0
        %340 = vmatpush1.xpose.msra.mxu0 0.0
        %341 = vmatprep.subr.mxu0 0.0
        %342 = vmatpush1.xpose.msra.mxu0 0.0
        %343 = vmatprep.subr.mxu0 0.0
        %344 = vmatpush1.xpose.msra.mxu0 0.0
        %345 = vmatprep.subr.mxu0 0.0
        %346 = vmatpush1.xpose.msra.mxu0 0.0
        %347 = vmatprep.subr.mxu0 0.0
        %348 = vmatpush1.xpose.msra.mxu0 0.0
        %349 = vmatprep.subr.mxu0 0.0
        %350 = vmatpush1.xpose.msra.mxu0 0.0
        %351 = vmatprep.subr.mxu0 0.0
        %352 = vmatpush1.xpose.msra.mxu0 0.0
        %353 = vmatprep.subr.mxu0 0.0
        %354 = vmatpush1.xpose.msra.mxu0 0.0
        %355 = vmatprep.subr.mxu0 0.0
        %356 = vmatpush1.xpose.msra.mxu0 0.0
        %357 = vmatprep.subr.mxu0 0.0
        %358 = vmatpush1.xpose.msra.mxu0 0.0
        %359 = vmatprep.subr.mxu0 0.0
        %360 = vmatpush1.xpose.msra.mxu0 0.0
        %361 = vmatprep.subr.mxu0 0.0
        %362 = vmatpush1.xpose.msra.mxu0 0.0
        %363 = vmatprep.subr.mxu0 0.0
        %364 = vmatpush1.xpose.msra.mxu0 0.0
        %365 = vmatprep.subr.mxu0 0.0
        %366 = vmatpush1.xpose.msra.mxu0 0.0
        %367 = vmatprep.mubr.f32.mxu0 0.0
        %368 = vmatmul.mubr.f32.gmra.mrb[0].mxu0 %v301
        %v369 = vpop.f32.mrb[0].mxu0
        %v370 = vadd.f32 0.0, %v369
        %v371 = vpop.f32.mrb[0].mxu0
        %372 = vdwg.mxu0
        %s373 = smul.u32 %s35, 8
        %v374 = vlaneseq
        %v375 = vand.u32 %v374, 127
        %v376 = vstv %s373
        %v377 = vadd.s32 %v376, %v375
        %s378 = sld [smem:[#allocation6 + %s33]]
        %v379 = vstv %s378
        %vm380 = vcmp.lt.s32.totalorder %v377, %v379
        %v381 = vsel %vm380, %v370, 1e-06
        %v382 = vld [vmem:[#allocation2] sm:$0xff]
        %vm383 = vcmask 64512
        %v384 = vsel %vm383, %v381, -inf
        %385 = vmax.xlane.f32.xlu0 %v384
        %v386 = vpop.xlane.xlu0 %385
        %v387 = vmax.f32 %v382, %v386
        %v388 = vsub.f32 %v382, %v387
        %v389 = vmul.f32 %v388, 1.442695
        %v390 = vpow.pop %v389
        %392 = vset.pattern.permute.xlu0 0
        %393 = vperm.xlu0 %392, %v387
        %v394 = vpop.permute.xlu0 %393
        %v396 = vsub.f32 %v381, %v394
        %v397 = vmul.f32 %v396, 1.442695
        %v398 = vpow.pop %v397
        %v399 = vld [vmem:[#allocation3] sm:$0xff]
        %v400 = vmul.f32 %v390, %v399
        %v401 = vsel %vm383, %v398, 0.0
        %402 = vadd.xlane.f32.xlu0 %v401
        %v403 = vpop.xlane.xlu0 %402
        %v404 = vadd.f32 %v400, %v403
        %vm405 = vcmask 7168
        %406 = vst.msk [vmem:[#allocation3] sm:$0xff] %vm405, %v404
        %v407 = vld [vmem:[#allocation4] sm:$0xff]
        %409 = vset.pattern.permute.xlu0 0
        %410 = vperm.xlu0 %409, %v390
        %v411 = vpop.permute.xlu0 %410
        %v413 = vmul.f32 %v411, %v407
        %v414 = vld [vmem:[%s259] sm:$0xff]
        %v416 = vsel %vm383, %v398, 0
        %418 = vmatprep.subr.mxu0 0.0
        %419 = vmatpush1.msra.mxu0 %v414
        %420 = vmatprep.subr.mxu0 0.0
        %421 = vmatpush1.msra.mxu0 0.0
        %422 = vmatprep.subr.mxu0 0.0
        %423 = vmatpush1.msra.mxu0 0.0
        %424 = vmatprep.subr.mxu0 0.0
        %425 = vmatpush1.msra.mxu0 0.0
        %426 = vmatprep.subr.mxu0 0.0
        %427 = vmatpush1.msra.mxu0 0.0
        %428 = vmatprep.subr.mxu0 0.0
        %429 = vmatpush1.msra.mxu0 0.0
        %430 = vmatprep.subr.mxu0 0.0
        %431 = vmatpush1.msra.mxu0 0.0
        %432 = vmatprep.subr.mxu0 0.0
        %433 = vmatpush1.msra.mxu0 0.0
        %434 = vmatprep.subr.mxu0 0.0
        %435 = vmatpush1.msra.mxu0 0.0
        %436 = vmatprep.subr.mxu0 0.0
        %437 = vmatpush1.msra.mxu0 0.0
        %438 = vmatprep.subr.mxu0 0.0
        %439 = vmatpush1.msra.mxu0 0.0
        %440 = vmatprep.subr.mxu0 0.0
        %441 = vmatpush1.msra.mxu0 0.0
        %442 = vmatprep.subr.mxu0 0.0
        %443 = vmatpush1.msra.mxu0 0.0
        %444 = vmatprep.subr.mxu0 0.0
        %445 = vmatpush1.msra.mxu0 0.0
        %446 = vmatprep.subr.mxu0 0.0
        %447 = vmatpush1.msra.mxu0 0.0
        %448 = vmatprep.subr.mxu0 0.0
        %449 = vmatpush1.msra.mxu0 0.0
        %450 = vmatprep.subr.mxu0 0.0
        %451 = vmatpush1.msra.mxu0 0.0
        %452 = vmatprep.subr.mxu0 0.0
        %453 = vmatpush1.msra.mxu0 0.0
        %454 = vmatprep.subr.mxu0 0.0
        %455 = vmatpush1.msra.mxu0 0.0
        %456 = vmatprep.subr.mxu0 0.0
        %457 = vmatpush1.msra.mxu0 0.0
        %458 = vmatprep.subr.mxu0 0.0
        %459 = vmatpush1.msra.mxu0 0.0
        %460 = vmatprep.subr.mxu0 0.0
        %461 = vmatpush1.msra.mxu0 0.0
        %462 = vmatprep.subr.mxu0 0.0
        %463 = vmatpush1.msra.mxu0 0.0
        %464 = vmatprep.subr.mxu0 0.0
        %465 = vmatpush1.msra.mxu0 0.0
        %466 = vmatprep.subr.mxu0 0.0
        %467 = vmatpush1.msra.mxu0 0.0
        %468 = vmatprep.subr.mxu0 0.0
        %469 = vmatpush1.msra.mxu0 0.0
        %470 = vmatprep.subr.mxu0 0.0
        %471 = vmatpush1.msra.mxu0 0.0
        %472 = vmatprep.subr.mxu0 0.0
        %473 = vmatpush1.msra.mxu0 0.0
        %474 = vmatprep.subr.mxu0 0.0
        %475 = vmatpush1.msra.mxu0 0.0
        %476 = vmatprep.subr.mxu0 0.0
        %477 = vmatpush1.msra.mxu0 0.0
        %478 = vmatprep.subr.mxu0 0.0
        %479 = vmatpush1.msra.mxu0 0.0
        %480 = vmatprep.subr.mxu0 0.0
        %481 = vmatpush1.msra.mxu0 0.0
        %482 = vmatprep.mubr.f32.mxu0 0.0
        %483 = vmatmul.mubr.f32.gmra.mrb[0].mxu0 %v416
        %v484 = vpop.f32.mrb[0].mxu0
        %v485 = vadd.f32 0.0, %v484
        %v486 = vpop.f32.mrb[0].mxu0
        %487 = vdwg.mxu0
        %v488 = vadd.f32 %v413, %v485
        %489 = vst [vmem:[#allocation4] sm:$0xff] %v488
        %490 = vst.msk [vmem:[#allocation2] sm:$0xff] %vm405, %v387
        // Predicated region
        $region49: #{tpu_custom_call.1} parent=31 // pred_check
          %p491 = pneg %p292
        $region50: #{tpu_custom_call.1} parent=31 // pred_check_branch
          %493 = sbr.rel (%p491) target = $region52
        $region51: #{tpu_custom_call.1} parent=31 // pred_region
          %v494 = vld [vmem:[#allocation3] sm:$0xff]
          %v495 = vrcp.pop %v494
          %v496 = vmul.f32 %v494, %v495
          %v497 = vsub.f32 2.0, %v496
          %v498 = vmul.f32 %v495, %v497
          %v499 = vld [vmem:[#allocation4] sm:$0xff]
          %501 = vset.pattern.permute.xlu0 0
          %502 = vperm.xlu0 %501, %v498
          %v503 = vpop.permute.xlu0 %502
          %v505 = vmul.f32 %v499, %v503
          %506 = vst [vmem:[%s291] sm:$0xff] %v505
        $region52: #{tpu_custom_call.1} parent=31 // pred_fallthru
          _
        %s507 = sand.u32 %s141, 1
        %s508 = scalar_lea.sflag [#allocation9], %s507
        %s509 = sand.u32 %s141, 1
        %s510 = smul.addr %s509, 8
        %s511 = scalar_lea.vmem [#allocation13], %s510
        // Predicated region
        $region53: #{tpu_custom_call.1} parent=31 // pred_check
          %p512 = pneg %p151
        $region54: #{tpu_custom_call.1} parent=31 // pred_check_branch
          %514 = sbr.rel (%p512) target = $region56
        $region55: #{tpu_custom_call.1} parent=31 // pred_region
          %s516 = ssub.s32 128, 128
          %517 = vsyncadd %s508, %s516
          %s518 = sadd.s32 %s34, %s33
          %s519 = smul.addr %s518, 128
          %s520 = scalar_lea.hbm %s4, %s519
          %s522 = sshll.u32 %s511, 4
          %s523 = int_to_ptr.vmem [resolvable:$true] %s522
          %525 = dma.vmem_to_hbm [thread:$0]  %s523, 128, %s520, %s508
        $region56: #{tpu_custom_call.1} parent=31 // pred_fallthru
          _
      $region32: #{tpu_custom_call.1} parent=5 // pred_fallthru
        _
      %p526 = scmp.le.s32.totalorder 2, %s23
      // Predicated region
      $region57: #{tpu_custom_call.1} parent=5 // pred_check
        %p527 = pneg %p526
      $region58: #{tpu_custom_call.1} parent=5 // pred_check_branch
        %529 = sbr.rel (%p527) target = $region60
      $region59: #{tpu_custom_call.1} parent=5 // pred_region
        %s530 = ssub.s32 %s23, 2
        // Predicated region
        $region61: #{tpu_custom_call.1} parent=59 // pred_check
          %p531 = pneg %p157
        $region62: #{tpu_custom_call.1} parent=59 // pred_check_branch
          %533 = sbr.rel (%p531) target = $region64
        $region63: #{tpu_custom_call.1} parent=59 // pred_region
          %s534 = sand.u32 %s142, 1
          %s535 = scalar_lea.sflag [#allocation9], %s534
          %s536 = sand.u32 %s142, 1
          %s537 = smul.addr %s536, 8
          %s538 = scalar_lea.vmem [#allocation13], %s537
          %539 = dma.done %s535, 128
        $region64: #{tpu_custom_call.1} parent=59 // pred_fallthru
          _
      $region60: #{tpu_custom_call.1} parent=5 // pred_fallthru
        _
    $region6: #{tpu_custom_call.1} parent=1 // loop_footer
      %s27 = sadd.s32 1, %s23
    $region7: #{tpu_custom_call.1} parent=1 // loop_footer_branch
      %22 = sbr.rel target = $region3
    $region8: #{tpu_custom_call.1} parent=1 // loop_exit
      _
    %540 = vsyncpa [#allocation8], 1
    %s541 = scalar_lea.sflag [#allocation8], 1
    %542 = vsyncpa %s541, 1
    %543 = vsyncpa [#allocation11], 1
    %s544 = scalar_lea.sflag [#allocation11], 1
    %545 = vsyncpa %s544, 1
    %546 = vsyncpa [#allocation9], 1
    %s547 = scalar_lea.sflag [#allocation9], 1
    %548 = vsyncpa %s547, 1

</llo_original>
